<compile_context>
chip_gen: v7x
topology: tpu7x:2x2x1
jax: 0.10.0
libtpu: 0.0.40
codegen_flags: <defaults>
</compile_context>

<pallas_src>
import functools
import math

import jax
import jax.numpy as jnp
from jax.experimental import pallas as pl
from jax.experimental.pallas import tpu as pltpu

_HALF_LOG_2PI = 0.5 * math.log(2.0 * math.pi)
_VMEM_LIMIT_BYTES = 32 * 1024 * 1024


def _round_up(x, m):
    return ((x + m - 1) // m) * m


def _mu_kernel(k_ref, obs_t_ref, mu_ref):
    # mu tile = K @ obs.T tile : (act_dim, obs_dim) @ (obs_dim, bt) -> (act_dim, bt)
    mu_ref[...] = jnp.dot(k_ref[...], obs_t_ref[...],
                          preferred_element_type=jnp.float32)


def _mu_logp_kernel(k_ref, obs_t_ref, act_ref, mu_ref, logp_ref, acc_ref, *,
                    log_std, n_valid):
    b = pl.program_id(0)

    @pl.when(b == 0)
    def _init():
        acc_ref[...] = jnp.zeros_like(acc_ref)

    mu = jnp.dot(k_ref[...], obs_t_ref[...], preferred_element_type=jnp.float32)
    mu_ref[...] = mu

    # Per-tile sum of squared residuals over the batch lanes.  Zero-padded batch
    # columns have act == mu == 0 so they contribute nothing to the sum.
    diff = act_ref[...] - mu
    acc_ref[...] += jnp.sum(diff * diff, axis=-1, keepdims=True)

    @pl.when(b == pl.num_programs(0) - 1)
    def _finalize():
        std = math.exp(log_std)
        inv_two_var = 1.0 / (2.0 * std * std)
        const = n_valid * (log_std + _HALF_LOG_2PI)   # hoisted constant terms
        logp_ref[...] = -acc_ref[...] * inv_two_var - const


class LinearGaussianActorPallas:
    """act = K @ obs + w, w ~ N(0, std).  forward(obs, act) -> ((mu, std), logp_a)."""

    def __init__(self, obs_dim, act_dim, noise_std, K_init=None):
        self.obs_dim = int(obs_dim)
        self.act_dim = int(act_dim)
        self.log_std = float(math.log(noise_std))
        if K_init is None:
            # The torch module initializes K to zeros; use a deterministic nonzero
            # init here so the matmul path is actually exercised.
            key = jax.random.PRNGKey(0)
            self.K = jax.random.normal(key, (act_dim, obs_dim), dtype=jnp.float32) * 0.1
        else:
            self.K = jnp.asarray(K_init, dtype=jnp.float32)

    def __call__(self, obs, act=None, *, block_batch=512):
        obs = jnp.asarray(obs, dtype=jnp.float32)
        batch = obs.shape[0]
        std = jnp.exp(jnp.float32(self.log_std))

        # Batch tile: a multiple of 128 lanes, capped at block_batch.
        bt = min(_round_up(block_batch, 128), _round_up(batch, 128))
        padded = _round_up(batch, bt)
        grid = (padded // bt,)

        # Present obs as (obs_dim, batch): plain MXU contraction, batch lane-major.
        obs_t = obs.T
        if padded != batch:
            obs_t = jnp.pad(obs_t, ((0, 0), (0, padded - batch)))

        k_spec = pl.BlockSpec((self.act_dim, self.obs_dim), lambda b: (0, 0))
        obs_spec = pl.BlockSpec((self.obs_dim, bt), lambda b: (0, b))
        mu_spec = pl.BlockSpec((self.act_dim, bt), lambda b: (0, b))

        if act is None:
            mu_pad = pl.pallas_call(
                _mu_kernel,
                out_shape=jax.ShapeDtypeStruct((self.act_dim, padded), jnp.float32),
                grid_spec=pltpu.PrefetchScalarGridSpec(
                    num_scalar_prefetch=0,
                    grid=grid,
                    in_specs=[k_spec, obs_spec],
                    out_specs=mu_spec,
                ),
                compiler_params=pltpu.CompilerParams(
                    dimension_semantics=("parallel",),      # independent batch tiles
                    vmem_limit_bytes=_VMEM_LIMIT_BYTES,
                ),
            )(self.K, obs_t)
            return (mu_pad[:, :batch], std), None

        act = jnp.asarray(act, dtype=jnp.float32)
        if padded != batch:
            act = jnp.pad(act, ((0, 0), (0, padded - batch)))

        kernel = functools.partial(
            _mu_logp_kernel, log_std=self.log_std, n_valid=float(batch))
        mu_pad, logp = pl.pallas_call(
            kernel,
            out_shape=(
                jax.ShapeDtypeStruct((self.act_dim, padded), jnp.float32),
                jax.ShapeDtypeStruct((self.act_dim, 1), jnp.float32),
            ),
            grid_spec=pltpu.PrefetchScalarGridSpec(
                num_scalar_prefetch=0,
                grid=grid,
                in_specs=[k_spec, obs_spec,
                          pl.BlockSpec((self.act_dim, bt), lambda b: (0, b))],
                out_specs=(mu_spec,
                           pl.BlockSpec((self.act_dim, 1), lambda b: (0, 0))),
                scratch_shapes=[pltpu.VMEM((self.act_dim, 1), jnp.float32)],
            ),
            compiler_params=pltpu.CompilerParams(
                # batch axis is a reduction into the logp accumulator
                dimension_semantics=("arbitrary",),
                vmem_limit_bytes=_VMEM_LIMIT_BYTES,
            ),
        )(self.K, obs_t, act)
        return (mu_pad[:, :batch], std), logp[:, 0]


def _reference(K, obs, act, log_std):
    mu = K @ obs.T
    std = math.exp(log_std)
    logp = -((act - mu) ** 2) / (2.0 * std * std) - log_std - _HALF_LOG_2PI
    return mu, logp.sum(axis=-1)


if __name__ == "__main__":
    # batch deliberately NOT a multiple of 128 to exercise the padding path;
    # block_batch=128 -> 2 grid steps exercises accumulator init/finalize.
    obs_dim, act_dim, batch = 16, 8, 200
    noise_std = 0.5

    key = jax.random.PRNGKey(0)
    k_obs, k_act = jax.random.split(key)
    obs = jax.random.normal(k_obs, (batch, obs_dim), dtype=jnp.float32)
    # act matches mu's (act_dim, batch) layout so Normal.log_prob broadcast is
    # elementwise, exactly as the torch forward would see it.
    act = jax.random.normal(k_act, (act_dim, batch), dtype=jnp.float32)

    actor = LinearGaussianActorPallas(obs_dim, act_dim, noise_std)

    (mu, std), logp_a = actor(obs, act, block_batch=128)
    jax.block_until_ready((mu, std, logp_a))

    mu_ref, logp_ref = _reference(actor.K, obs, act, actor.log_std)
    assert mu.shape == (act_dim, batch)
    assert logp_a.shape == (act_dim,)
    assert jnp.allclose(mu, mu_ref, atol=1e-5, rtol=1e-5)
    assert jnp.allclose(logp_a, logp_ref, atol=5e-3, rtol=1e-4)
    assert jnp.allclose(std, jnp.float32(noise_std))

    # act=None path (distribution only, no logp).
    (mu2, _), logp_none = actor(obs, None, block_batch=128)
    jax.block_until_ready(mu2)
    assert logp_none is None
    assert jnp.allclose(mu2, mu_ref, atol=1e-5, rtol=1e-5)

    print("KERNEL_OK")
</pallas_src>

<mosaic_0001>
module attributes {stable_mosaic.version = 11 : i64} {
  func.func @_mu_logp_kernel(%arg0: i32, %arg1: memref<8x16xf32, #tpu.memory_space<vmem>>, %arg2: memref<16x128xf32, #tpu.memory_space<vmem>>, %arg3: memref<8x128xf32, #tpu.memory_space<vmem>>, %arg4: memref<8x128xf32, #tpu.memory_space<vmem>>, %arg5: memref<8x1xf32, #tpu.memory_space<vmem>>, %arg6: memref<8x1xf32, #tpu.memory_space<vmem>>) attributes {dimension_semantics = [#tpu.dimension_semantics<arbitrary>], iteration_bounds = array<i64: 2>, scalar_prefetch = 0 : i64, scratch_operands = 1 : i64, tpu.core_type = #tpu.core_type<tc>, window_params = [{pipeline_mode = #tpu.pipeline_mode<synchronous>, transform_indices = @transform_0, window_bounds = array<i64: 8, 16>}, {transform_indices = @transform_1, window_bounds = array<i64: 16, 128>}, {transform_indices = @transform_2, window_bounds = array<i64: 8, 128>}, {transform_indices = @transform_3, window_bounds = array<i64: 8, 128>}, {pipeline_mode = #tpu.pipeline_mode<synchronous>, transform_indices = @transform_4, window_bounds = array<i64: 8, 1>}]} {
    %c0_i32 = arith.constant 0 : i32
    %0 = arith.cmpi eq, %arg0, %c0_i32 : i32
    %1 = arith.extui %0 : i1 to i32
    %c0_i32_0 = arith.constant 0 : i32
    %2 = arith.cmpi ne, %1, %c0_i32_0 : i32
    scf.if %2 {
      %cst_14 = arith.constant 0.000000e+00 : f32
      %18 = vector.broadcast %cst_14 : f32 to vector<8x1xf32>
      %c0_15 = arith.constant 0 : index
      %c0_16 = arith.constant 0 : index
      %19 = vector.load %arg6[%c0_15, %c0_16] : memref<8x1xf32, #tpu.memory_space<vmem>>, vector<8x1xf32>
      tpu.vector_store %arg6[%c0_15, %c0_16], %18 {strides = array<i32>} : memref<8x1xf32, #tpu.memory_space<vmem>>, vector<8x1xf32>,
    } else {
    }
    %c0 = arith.constant 0 : index
    %c0_1 = arith.constant 0 : index
    %3 = vector.load %arg1[%c0, %c0_1] : memref<8x16xf32, #tpu.memory_space<vmem>>, vector<8x16xf32>
    %c0_2 = arith.constant 0 : index
    %c0_3 = arith.constant 0 : index
    %4 = vector.load %arg2[%c0_2, %c0_3] : memref<16x128xf32, #tpu.memory_space<vmem>>, vector<16x128xf32>
    %cst = arith.constant dense<0.000000e+00> : vector<8x128xf32>
    %5 = tpu.matmul %3, %4, %cst {dimension_numbers = #tpu.dot_dimension_numbers<[1], [0], [0], [1], [0, 0, 1, 1], [], []>} : vector<8x16xf32>, vector<16x128xf32>, vector<8x128xf32> -> vector<8x128xf32>
    %c0_4 = arith.constant 0 : index
    %c0_5 = arith.constant 0 : index
    %6 = vector.load %arg4[%c0_4, %c0_5] : memref<8x128xf32, #tpu.memory_space<vmem>>, vector<8x128xf32>
    tpu.vector_store %arg4[%c0_4, %c0_5], %5 {strides = array<i32>} : memref<8x128xf32, #tpu.memory_space<vmem>>, vector<8x128xf32>,
    %c0_6 = arith.constant 0 : index
    %c0_7 = arith.constant 0 : index
    %7 = vector.load %arg3[%c0_6, %c0_7] : memref<8x128xf32, #tpu.memory_space<vmem>>, vector<8x128xf32>
    %8 = arith.subf %7, %5 : vector<8x128xf32>
    %c0_8 = arith.constant 0 : index
    %c0_9 = arith.constant 0 : index
    %9 = vector.load %arg6[%c0_8, %c0_9] : memref<8x1xf32, #tpu.memory_space<vmem>>, vector<8x1xf32>
    %10 = arith.mulf %8, %8 : vector<8x128xf32>
    %cst_10 = arith.constant dense<0.000000e+00> : vector<8xf32>
    %11 = vector.multi_reduction <add>, %10, %cst_10 [1] : vector<8x128xf32> to vector<8xf32>
    %12 = vector.shape_cast %11 : vector<8xf32> to vector<8x1xf32>
    %13 = arith.addf %9, %12 : vector<8x1xf32>
    %c0_11 = arith.constant 0 : index
    %c0_12 = arith.constant 0 : index
    %14 = vector.load %arg6[%c0_11, %c0_12] : memref<8x1xf32, #tpu.memory_space<vmem>>, vector<8x1xf32>
    tpu.vector_store %arg6[%c0_11, %c0_12], %13 {strides = array<i32>} : memref<8x1xf32, #tpu.memory_space<vmem>>, vector<8x1xf32>,
    %c1_i32 = arith.constant 1 : i32
    %15 = arith.cmpi eq, %arg0, %c1_i32 : i32
    %16 = arith.extui %15 : i1 to i32
    %c0_i32_13 = arith.constant 0 : i32
    %17 = arith.cmpi ne, %16, %c0_i32_13 : i32
    scf.if %17 {
      %c0_14 = arith.constant 0 : index
      %c0_15 = arith.constant 0 : index
      %18 = vector.load %arg6[%c0_14, %c0_15] : memref<8x1xf32, #tpu.memory_space<vmem>>, vector<8x1xf32>
      %cst_16 = arith.constant 0.000000e+00 : f32
      %19 = vector.broadcast %cst_16 : f32 to vector<8x1xf32>
      %20 = arith.subf %19, %18 : vector<8x1xf32>
      %cst_17 = arith.constant 2.000000e+00 : f32
      %21 = vector.broadcast %cst_17 : f32 to vector<8x1xf32>
      %22 = arith.mulf %20, %21 : vector<8x1xf32>
      %cst_18 = arith.constant 45.1582718 : f32
      %23 = vector.broadcast %cst_18 : f32 to vector<8x1xf32>
      %24 = arith.subf %22, %23 : vector<8x1xf32>
      %c0_19 = arith.constant 0 : index
      %c0_20 = arith.constant 0 : index
      %25 = vector.load %arg5[%c0_19, %c0_20] : memref<8x1xf32, #tpu.memory_space<vmem>>, vector<8x1xf32>
      tpu.vector_store %arg5[%c0_19, %c0_20], %24 {strides = array<i32>} : memref<8x1xf32, #tpu.memory_space<vmem>>, vector<8x1xf32>,
    } else {
    }
    return
  }
  func.func @transform_0(%arg0: i32) -> (i32, i32) {
    %c0_i32 = arith.constant 0 : i32
    %c0_i32_0 = arith.constant 0 : i32
    %c0_i32_1 = arith.constant 0 : i32
    return %c0_i32, %c0_i32_0 : i32, i32
  }
  func.func @transform_1(%arg0: i32) -> (i32, i32) {
    %c0_i32 = arith.constant 0 : i32
    %c0_i32_0 = arith.constant 0 : i32
    return %c0_i32, %arg0 : i32, i32
  }
  func.func @transform_2(%arg0: i32) -> (i32, i32) {
    %c0_i32 = arith.constant 0 : i32
    %c0_i32_0 = arith.constant 0 : i32
    return %c0_i32, %arg0 : i32, i32
  }
  func.func @transform_3(%arg0: i32) -> (i32, i32) {
    %c0_i32 = arith.constant 0 : i32
    %c0_i32_0 = arith.constant 0 : i32
    return %c0_i32, %arg0 : i32, i32
  }
  func.func @transform_4(%arg0: i32) -> (i32, i32) {
    %c0_i32 = arith.constant 0 : i32
    %c0_i32_0 = arith.constant 0 : i32
    %c0_i32_1 = arith.constant 0 : i32
    return %c0_i32, %c0_i32_0 : i32, i32
  }
}

</mosaic_0001>

<llo_original>
// kernel: tpu_custom_call.1
$region0: #{tpu_custom_call.1}
  #allocation0 [shape = 'u32[]', space=smem, size = 0x4, offset = 0x4, fixed_abs, tag = 'smem constant byte address 0x4 - core index']
  #allocation1 [shape = 'u32[144,128]{1,0:T(1,128)}', space=vmem, size = 0x12000, scoped, tag = 'internal scratch']
  #allocation2 [shape = 'f32[8,1]{1,0:T(8,128)}', space=vmem, size = 0x1000, scoped, tag = 'scratch operand']
  %s0 = inlined_call_operand.hbm [shape: f32[8,16], index: 0, kind: input, shape index: {}]
  %s1 = inlined_call_operand.hbm [shape: f32[16,256], index: 1, kind: input, shape index: {}]
  %s2 = inlined_call_operand.hbm [shape: f32[8,256], index: 2, kind: input, shape index: {}]
  %s3 = inlined_call_operand.hbm [shape: f32[8,256], index: 3, kind: output, shape index: {0}]
  %s4 = inlined_call_operand.vmem [shape: f32[8,1], index: 4, kind: output, shape index: {1}]
  %5 = xla_tuple %s3, %s4
  %s6 = sld [smem:[#allocation0]]
  $region73: #{tpu_custom_call.1} parent=0
    _
  %s8 = ssub.s32 1, %s6
  %s9 = scalar_select 0, %s8, %s6
  $region1: #{tpu_custom_call.1} parent=0
    #allocation3 [shape = 'u8[4096]{0}', space=vmem, size = 0x1000, scoped, tag = 'input window, operand 0, single buffered']
    #allocation4 [shape = 's32[2]{0}', space=sflag, size = 0x8, scoped, tag = 'scoped memory for tpu_custom_call.1']
    #allocation5 [shape = 's32[2]{0}', space=sflag, size = 0x8, scoped, tag = 'scoped memory for tpu_custom_call.1']
    #allocation6 [shape = 'u8[16384]{0}', space=vmem, size = 0x4000, scoped, tag = 'input window, operand 1']
    #allocation7 [shape = 's32[2]{0}', space=sflag, size = 0x8, scoped, tag = 'scoped memory for tpu_custom_call.1']
    #allocation8 [shape = 'u8[8192]{0}', space=vmem, size = 0x2000, scoped, tag = 'input window, operand 2']
    #allocation9 [shape = 'u8[8192]{0}', space=vmem, size = 0x2000, scoped, tag = 'output window, operand 0']
    %10 = vsyncpa [#allocation4], 0
    %11 = vsyncpa [#allocation7], 0
    %s12 = scalar_lea.sflag [#allocation7], 1
    %13 = vsyncpa %s12, 0
    %14 = vsyncpa [#allocation5], 0
    %s15 = scalar_lea.sflag [#allocation5], 1
    %16 = vsyncpa %s15, 0
    loop: start=0, step=1, limit=4
    $region2: #{tpu_custom_call.1} parent=1 // loop_pre_header
      _
    $region3: #{tpu_custom_call.1} parent=1 // loop_header
      %s18 = sphi 0, %s22
      %p19 = scmp.ge.s32.totalorder %s18, 4
      %s26 = sphi 0, %s26
      %s28 = sphi 0, %s26
      %s29 = sphi 0, %s28
      %s43 = sphi 0, %s29
      %s49 = sphi 0, %s51
      %s52 = sphi 0, %s49
      %s53 = sphi 0, %s52
      %s69 = sphi 0, %s53
      %s75 = sphi 0, %s77
      %s78 = sphi 0, %s75
      %s79 = sphi 0, %s78
      %s95 = sphi 0, %s79
      %s101 = sphi 0, %s103
      %s104 = sphi 0, %s101
      %s105 = sphi 0, %s104
      %s121 = sphi 0, %s105
      %s125 = sphi 0, %s125
      %s127 = sphi 0, %s125
      %s128 = sphi 0, %s127
      %s142 = sphi 0, %s128
    $region4: #{tpu_custom_call.1} parent=1 // loop_header_branch
      %21 = sbr.rel (%p19) target = $region8
    $region5: #{tpu_custom_call.1} parent=1 // loop_body
      %s23 = ssub.s32 %s18, 1
      %s24 = ssub.s32 %s18, 2
      %s25 = sadd.s32 %s18, 1
      %s27 = sadd.s32 %s26, 1
      %p30 = scmp.eq.s32.totalorder %s18, 1
      %p31 = scmp.ne.s32.totalorder %s26, %s28
      %p32 = scmp.eq.s32.totalorder %s18, 0
      %p33 = por %p31, %p32
      %p34 = scmp.ne.s32.totalorder %s26, %s28
      %p35 = scmp.eq.s32.totalorder %s23, 1
      %p36 = por %p34, %p35
      %p37 = scmp.ne.s32.totalorder %s28, %s29
      %p38 = scmp.eq.s32.totalorder %s23, 0
      %p39 = por %p37, %p38
      %p40 = scmp.ne.s32.totalorder %s28, %s29
      %p41 = scmp.eq.s32.totalorder %s24, 1
      %p42 = por %p40, %p41
      %p44 = scmp.ne.s32.totalorder %s29, %s43
      %p45 = scmp.eq.s32.totalorder %s24, 0
      %p46 = por %p44, %p45
      %s47 = ssub.s32 %s18, %s25
      %p48 = scmp.eq.s32.totalorder %s47, 0
      %s50 = sadd.s32 %s49, 1
      %s51 = scalar_select %p48, %s49, %s50
      %p54 = pneg %p48
      %p55 = scmp.eq.s32.totalorder %s18, 1
      %p56 = por %p54, %p55
      %p57 = scmp.ne.s32.totalorder %s49, %s52
      %p58 = scmp.eq.s32.totalorder %s18, 0
      %p59 = por %p57, %p58
      %p60 = scmp.ne.s32.totalorder %s49, %s52
      %p61 = scmp.eq.s32.totalorder %s23, 1
      %p62 = por %p60, %p61
      %p63 = scmp.ne.s32.totalorder %s52, %s53
      %p64 = scmp.eq.s32.totalorder %s23, 0
      %p65 = por %p63, %p64
      %p66 = scmp.ne.s32.totalorder %s52, %s53
      %p67 = scmp.eq.s32.totalorder %s24, 1
      %p68 = por %p66, %p67
      %p70 = scmp.ne.s32.totalorder %s53, %s69
      %p71 = scmp.eq.s32.totalorder %s24, 0
      %p72 = por %p70, %p71
      %s73 = ssub.s32 %s18, %s25
      %p74 = scmp.eq.s32.totalorder %s73, 0
      %s76 = sadd.s32 %s75, 1
      %s77 = scalar_select %p74, %s75, %s76
      %p80 = pneg %p74
      %p81 = scmp.eq.s32.totalorder %s18, 1
      %p82 = por %p80, %p81
      %p83 = scmp.ne.s32.totalorder %s75, %s78
      %p84 = scmp.eq.s32.totalorder %s18, 0
      %p85 = por %p83, %p84
      %p86 = scmp.ne.s32.totalorder %s75, %s78
      %p87 = scmp.eq.s32.totalorder %s23, 1
      %p88 = por %p86, %p87
      %p89 = scmp.ne.s32.totalorder %s78, %s79
      %p90 = scmp.eq.s32.totalorder %s23, 0
      %p91 = por %p89, %p90
      %p92 = scmp.ne.s32.totalorder %s78, %s79
      %p93 = scmp.eq.s32.totalorder %s24, 1
      %p94 = por %p92, %p93
      %p96 = scmp.ne.s32.totalorder %s79, %s95
      %p97 = scmp.eq.s32.totalorder %s24, 0
      %p98 = por %p96, %p97
      %s99 = ssub.s32 %s18, %s25
      %p100 = scmp.eq.s32.totalorder %s99, 0
      %s102 = sadd.s32 %s101, 1
      %s103 = scalar_select %p100, %s101, %s102
      %p106 = pneg %p100
      %p107 = scmp.eq.s32.totalorder %s18, 1
      %p108 = por %p106, %p107
      %p109 = scmp.ne.s32.totalorder %s101, %s104
      %p110 = scmp.eq.s32.totalorder %s18, 0
      %p111 = por %p109, %p110
      %p112 = scmp.ne.s32.totalorder %s101, %s104
      %p113 = scmp.eq.s32.totalorder %s23, 1
      %p114 = por %p112, %p113
      %p115 = scmp.ne.s32.totalorder %s104, %s105
      %p116 = scmp.eq.s32.totalorder %s23, 0
      %p117 = por %p115, %p116
      %p118 = scmp.ne.s32.totalorder %s104, %s105
      %p119 = scmp.eq.s32.totalorder %s24, 1
      %p120 = por %p118, %p119
      %p122 = scmp.ne.s32.totalorder %s105, %s121
      %p123 = scmp.eq.s32.totalorder %s24, 0
      %p124 = por %p122, %p123
      %s126 = sadd.s32 %s125, 1
      %p129 = scmp.eq.s32.totalorder %s18, 1
      %p130 = scmp.ne.s32.totalorder %s125, %s127
      %p131 = scmp.eq.s32.totalorder %s18, 0
      %p132 = por %p130, %p131
      %p133 = scmp.ne.s32.totalorder %s125, %s127
      %p134 = scmp.eq.s32.totalorder %s23, 1
      %p135 = por %p133, %p134
      %p136 = scmp.ne.s32.totalorder %s127, %s128
      %p137 = scmp.eq.s32.totalorder %s23, 0
      %p138 = por %p136, %p137
      %p139 = scmp.ne.s32.totalorder %s127, %s128
      %p140 = scmp.eq.s32.totalorder %s24, 1
      %p141 = por %p139, %p140
      %p143 = scmp.ne.s32.totalorder %s128, %s142
      %p144 = scmp.eq.s32.totalorder %s24, 0
      %p145 = por %p143, %p144
      %p146 = scmp.le.s32.totalorder 1, %s18
      %p147 = scmp.lt.s32.totalorder %s18, 3
      %p148 = pnand %p146, %p147
      %p149 = pneg %p148
      // Predicated region
      $region9: #{tpu_custom_call.1} parent=5 // pred_check
        _
      $region10: #{tpu_custom_call.1} parent=5 // pred_check_branch
        %151 = sbr.rel (%p148) target = $region12
      $region11: #{tpu_custom_call.1} parent=5 // pred_region
        %s152 = ssub.s32 %s18, 1
        // Predicated region
        $region13: #{tpu_custom_call.1} parent=11 // pred_check
          %p153 = pneg %p39
        $region14: #{tpu_custom_call.1} parent=11 // pred_check_branch
          %155 = sbr.rel (%p153) target = $region16
        $region15: #{tpu_custom_call.1} parent=11 // pred_region
          %s157 = ssub.s32 128, 128
          %158 = vsyncadd [#allocation4], %s157
          %s160 = sshll.u32 [#allocation3], 4
          %s161 = int_to_ptr.vmem [resolvable:$true] %s160
          %163 = dma.hbm_to_vmem [thread:$0]  %s0, 128, %s161, [#allocation4]
        $region16: #{tpu_custom_call.1} parent=11 // pred_fallthru
          _
      $region12: #{tpu_custom_call.1} parent=5 // pred_fallthru
        _
      %p164 = scmp.lt.s32.totalorder %s18, 2
      // Predicated region
      $region17: #{tpu_custom_call.1} parent=5 // pred_check
        %p165 = pneg %p164
      $region18: #{tpu_custom_call.1} parent=5 // pred_check_branch
        %167 = sbr.rel (%p165) target = $region20
      $region19: #{tpu_custom_call.1} parent=5 // pred_region
        // Predicated region
        $region21: #{tpu_custom_call.1} parent=19 // pred_check
          %p168 = pneg %p59
        $region22: #{tpu_custom_call.1} parent=19 // pred_check_branch
          %170 = sbr.rel (%p168) target = $region24
        $region23: #{tpu_custom_call.1} parent=19 // pred_region
          %s171 = sand.u32 %s18, 1
          %s172 = scalar_lea.sflag [#allocation7], %s171
          %s173 = sand.u32 %s49, 1
          %s174 = smul.addr %s173, 16
          %s175 = scalar_lea.vmem [#allocation6], %s174
          %s177 = ssub.s32 256, 256
          %178 = vsyncadd %s172, %s177
          %s179 = smul.addr %s18, 128
          %s180 = scalar_lea.hbm %s1, %s179
          %s181 = sshll.u32 %s175, 4
          %s182 = int_to_ptr.vmem [resolvable:$true] %s181
          %187 = dma.hbm_to_vmem [thread:$0]  %s180, 256, %s182, %s172, 256, 128, 8
        $region24: #{tpu_custom_call.1} parent=19 // pred_fallthru
          _
        // Predicated region
        $region25: #{tpu_custom_call.1} parent=19 // pred_check
          %p188 = pneg %p85
        $region26: #{tpu_custom_call.1} parent=19 // pred_check_branch
          %190 = sbr.rel (%p188) target = $region28
        $region27: #{tpu_custom_call.1} parent=19 // pred_region
          %s191 = sand.u32 %s18, 1
          %s192 = scalar_lea.sflag [#allocation7], %s191
          %s193 = sand.u32 %s75, 1
          %s194 = smul.addr %s193, 8
          %s195 = scalar_lea.vmem [#allocation8], %s194
          %s197 = ssub.s32 128, 128
          %198 = vsyncadd %s192, %s197
          %s199 = smul.addr %s18, 128
          %s200 = scalar_lea.hbm %s2, %s199
          %s202 = sshll.u32 %s195, 4
          %s203 = int_to_ptr.vmem [resolvable:$true] %s202
          %205 = dma.hbm_to_vmem [thread:$0]  %s200, 128, %s203, %s192
        $region28: #{tpu_custom_call.1} parent=19 // pred_fallthru
          _
      $region20: #{tpu_custom_call.1} parent=5 // pred_fallthru
        _
      %p206 = scmp.le.s32.totalorder 1, %s18
      %p207 = scmp.lt.s32.totalorder %s18, 3
      %p208 = pnand %p206, %p207
      %p209 = pneg %p208
      // Predicated region
      $region29: #{tpu_custom_call.1} parent=5 // pred_check
        _
      $region30: #{tpu_custom_call.1} parent=5 // pred_check_branch
        %211 = sbr.rel (%p208) target = $region32
      $region31: #{tpu_custom_call.1} parent=5 // pred_region
        %s212 = ssub.s32 %s18, 1
        // Predicated region
        $region33: #{tpu_custom_call.1} parent=31 // pred_check
          %p213 = pneg %p39
        $region34: #{tpu_custom_call.1} parent=31 // pred_check_branch
          %215 = sbr.rel (%p213) target = $region36
        $region35: #{tpu_custom_call.1} parent=31 // pred_region
          %216 = dma.done [#allocation4], 128
        $region36: #{tpu_custom_call.1} parent=31 // pred_fallthru
          _
        %s217 = sand.u32 %s23, 1
        %s218 = scalar_lea.sflag [#allocation7], %s217
        %s219 = sand.u32 %s52, 1
        %s220 = smul.addr %s219, 16
        %s221 = scalar_lea.vmem [#allocation6], %s220
        // Predicated region
        $region37: #{tpu_custom_call.1} parent=31 // pred_check
          %p222 = pneg %p65
        $region38: #{tpu_custom_call.1} parent=31 // pred_check_branch
          %224 = sbr.rel (%p222) target = $region40
        $region39: #{tpu_custom_call.1} parent=31 // pred_region
          %225 = dma.done %s218, 256
        $region40: #{tpu_custom_call.1} parent=31 // pred_fallthru
          _
        %s226 = sand.u32 %s23, 1
        %s227 = scalar_lea.sflag [#allocation7], %s226
        %s228 = sand.u32 %s78, 1
        %s229 = smul.addr %s228, 8
        %s230 = scalar_lea.vmem [#allocation8], %s229
        // Predicated region
        $region41: #{tpu_custom_call.1} parent=31 // pred_check
          %p231 = pneg %p91
        $region42: #{tpu_custom_call.1} parent=31 // pred_check_branch
          %233 = sbr.rel (%p231) target = $region44
        $region43: #{tpu_custom_call.1} parent=31 // pred_region
          %234 = dma.done %s227, 128
        $region44: #{tpu_custom_call.1} parent=31 // pred_fallthru
          _
        %p235 = pneg %p39
        %p236 = pneg %p36
        %s237 = sand.u32 %s23, 1
        %s238 = scalar_lea.sflag [#allocation7], %s237
        %s239 = sand.u32 %s52, 1
        %s240 = smul.addr %s239, 16
        %s241 = scalar_lea.vmem [#allocation6], %s240
        %p242 = pneg %p65
        %p243 = pneg %p62
        %s244 = sand.u32 %s23, 1
        %s245 = scalar_lea.sflag [#allocation7], %s244
        %s246 = sand.u32 %s78, 1
        %s247 = smul.addr %s246, 8
        %s248 = scalar_lea.vmem [#allocation8], %s247
        %p249 = pneg %p91
        %p250 = pneg %p88
        %p251 = pneg %p117
        %p252 = pneg %p114
        %s253 = sand.u32 %s104, 1
        %s254 = scalar_lea.sflag [#allocation5], %s253
        %s255 = sand.u32 %s104, 1
        %s256 = smul.addr %s255, 8
        %s257 = scalar_lea.vmem [#allocation9], %s256
        %p258 = pneg %p138
        %p259 = pneg %p135
        %p260 = scmp.eq.s32.totalorder %s23, 0
        // Predicated region
        $region45: #{tpu_custom_call.1} parent=31 // pred_check
          %p261 = pneg %p260
        $region46: #{tpu_custom_call.1} parent=31 // pred_check_branch
          %263 = sbr.rel (%p261) target = $region48
        $region47: #{tpu_custom_call.1} parent=31 // pred_region
          %vm264 = vcmask 7168
          %265 = vst.msk [vmem:[#allocation2] sm:$0xff] %vm264, 0.0
        $region48: #{tpu_custom_call.1} parent=31 // pred_fallthru
          _
        %v266 = vld [vmem:[#allocation3] sm:$0xff]
        %v267 = vld [vmem:[%s221] sm:$0xff]
        %v268 = vld [vmem:[%s221 + $0x8] sm:$0xff]
        %vm269 = vcmask 130048
        %v271 = vsel %vm269, %v266, 0
        %273 = vmatprep.subr.mxu0 0.0
        %274 = vmatpush1.msra.mxu0 %v267
        %275 = vmatprep.subr.mxu0 0.0
        %276 = vmatpush1.msra.mxu0 %v268
        %277 = vmatprep.subr.mxu0 0.0
        %278 = vmatpush1.msra.mxu0 0.0
        %279 = vmatprep.subr.mxu0 0.0
        %280 = vmatpush1.msra.mxu0 0.0
        %281 = vmatprep.subr.mxu0 0.0
        %282 = vmatpush1.msra.mxu0 0.0
        %283 = vmatprep.subr.mxu0 0.0
        %284 = vmatpush1.msra.mxu0 0.0
        %285 = vmatprep.subr.mxu0 0.0
        %286 = vmatpush1.msra.mxu0 0.0
        %287 = vmatprep.subr.mxu0 0.0
        %288 = vmatpush1.msra.mxu0 0.0
        %289 = vmatprep.subr.mxu0 0.0
        %290 = vmatpush1.msra.mxu0 0.0
        %291 = vmatprep.subr.mxu0 0.0
        %292 = vmatpush1.msra.mxu0 0.0
        %293 = vmatprep.subr.mxu0 0.0
        %294 = vmatpush1.msra.mxu0 0.0
        %295 = vmatprep.subr.mxu0 0.0
        %296 = vmatpush1.msra.mxu0 0.0
        %297 = vmatprep.subr.mxu0 0.0
        %298 = vmatpush1.msra.mxu0 0.0
        %299 = vmatprep.subr.mxu0 0.0
        %300 = vmatpush1.msra.mxu0 0.0
        %301 = vmatprep.subr.mxu0 0.0
        %302 = vmatpush1.msra.mxu0 0.0
        %303 = vmatprep.subr.mxu0 0.0
        %304 = vmatpush1.msra.mxu0 0.0
        %305 = vmatprep.subr.mxu0 0.0
        %306 = vmatpush1.msra.mxu0 0.0
        %307 = vmatprep.subr.mxu0 0.0
        %308 = vmatpush1.msra.mxu0 0.0
        %309 = vmatprep.subr.mxu0 0.0
        %310 = vmatpush1.msra.mxu0 0.0
        %311 = vmatprep.subr.mxu0 0.0
        %312 = vmatpush1.msra.mxu0 0.0
        %313 = vmatprep.subr.mxu0 0.0
        %314 = vmatpush1.msra.mxu0 0.0
        %315 = vmatprep.subr.mxu0 0.0
        %316 = vmatpush1.msra.mxu0 0.0
        %317 = vmatprep.subr.mxu0 0.0
        %318 = vmatpush1.msra.mxu0 0.0
        %319 = vmatprep.subr.mxu0 0.0
        %320 = vmatpush1.msra.mxu0 0.0
        %321 = vmatprep.subr.mxu0 0.0
        %322 = vmatpush1.msra.mxu0 0.0
        %323 = vmatprep.subr.mxu0 0.0
        %324 = vmatpush1.msra.mxu0 0.0
        %325 = vmatprep.subr.mxu0 0.0
        %326 = vmatpush1.msra.mxu0 0.0
        %327 = vmatprep.subr.mxu0 0.0
        %328 = vmatpush1.msra.mxu0 0.0
        %329 = vmatprep.subr.mxu0 0.0
        %330 = vmatpush1.msra.mxu0 0.0
        %331 = vmatprep.subr.mxu0 0.0
        %332 = vmatpush1.msra.mxu0 0.0
        %333 = vmatprep.subr.mxu0 0.0
        %334 = vmatpush1.msra.mxu0 0.0
        %335 = vmatprep.subr.mxu0 0.0
        %336 = vmatpush1.msra.mxu0 0.0
        %337 = vmatprep.mubr.f32.mxu0 0.0
        %338 = vmatmul.mubr.f32.gmra.mrb[0].mxu0 %v271
        %v339 = vpop.f32.mrb[0].mxu0
        %v340 = vadd.f32 0.0, %v339
        %v341 = vpop.f32.mrb[0].mxu0
        %342 = vdwg.mxu0
        %343 = vst [vmem:[%s257] sm:$0xff] %v340
        %v344 = vld [vmem:[%s230] sm:$0xff]
        %v345 = vsub.f32 %v344, %v340
        %v346 = vld [vmem:[#allocation2] sm:$0xff]
        %v347 = vmul.f32 %v345, %v345
        %348 = vadd.xlane.f32.xlu0 %v347
        %v349 = vpop.xlane.xlu0 %348
        %v350 = vadd.f32 %v346, %v349
        %vm351 = vcmask 7168
        %352 = vst.msk [vmem:[#allocation2] sm:$0xff] %vm351, %v350
        %p353 = scmp.eq.s32.totalorder %s23, 1
        // Predicated region
        $region49: #{tpu_custom_call.1} parent=31 // pred_check
          %p354 = pneg %p353
        $region50: #{tpu_custom_call.1} parent=31 // pred_check_branch
          %356 = sbr.rel (%p354) target = $region52
        $region51: #{tpu_custom_call.1} parent=31 // pred_region
          %v357 = vld [vmem:[#allocation2] sm:$0xff]
          %v358 = vsub.f32 0.0, %v357
          %v359 = vmul.f32 %v358, 2.0
          %v360 = vsub.f32 %v359, 45.15827
          %361 = vst.msk [vmem:[%s4] sm:$0xff] %vm351, %v360
        $region52: #{tpu_custom_call.1} parent=31 // pred_fallthru
          _
        %s362 = sand.u32 %s104, 1
        %s363 = scalar_lea.sflag [#allocation5], %s362
        %s364 = sand.u32 %s104, 1
        %s365 = smul.addr %s364, 8
        %s366 = scalar_lea.vmem [#allocation9], %s365
        // Predicated region
        $region53: #{tpu_custom_call.1} parent=31 // pred_check
          %p367 = pneg %p114
        $region54: #{tpu_custom_call.1} parent=31 // pred_check_branch
          %369 = sbr.rel (%p367) target = $region56
        $region55: #{tpu_custom_call.1} parent=31 // pred_region
          %s371 = ssub.s32 128, 128
          %372 = vsyncadd %s363, %s371
          %s373 = smul.addr %s23, 128
          %s374 = scalar_lea.hbm %s3, %s373
          %s376 = sshll.u32 %s366, 4
          %s377 = int_to_ptr.vmem [resolvable:$true] %s376
          %379 = dma.vmem_to_hbm [thread:$0]  %s377, 128, %s374, %s363
        $region56: #{tpu_custom_call.1} parent=31 // pred_fallthru
          _
        // Predicated region
        $region57: #{tpu_custom_call.1} parent=31 // pred_check
          %p380 = pneg %p135
        $region58: #{tpu_custom_call.1} parent=31 // pred_check_branch
          %382 = sbr.rel (%p380) target = $region60
        $region59: #{tpu_custom_call.1} parent=31 // pred_region
          _
        $region60: #{tpu_custom_call.1} parent=31 // pred_fallthru
          _
        // Predicated region
        $region61: #{tpu_custom_call.1} parent=31 // pred_check
          %p383 = pneg %p135
        $region62: #{tpu_custom_call.1} parent=31 // pred_check_branch
          %385 = sbr.rel (%p383) target = $region64
        $region63: #{tpu_custom_call.1} parent=31 // pred_region
          _
        $region64: #{tpu_custom_call.1} parent=31 // pred_fallthru
          _
      $region32: #{tpu_custom_call.1} parent=5 // pred_fallthru
        _
      %p386 = scmp.le.s32.totalorder 2, %s18
      // Predicated region
      $region65: #{tpu_custom_call.1} parent=5 // pred_check
        %p387 = pneg %p386
      $region66: #{tpu_custom_call.1} parent=5 // pred_check_branch
        %389 = sbr.rel (%p387) target = $region68
      $region67: #{tpu_custom_call.1} parent=5 // pred_region
        %s390 = ssub.s32 %s18, 2
        // Predicated region
        $region69: #{tpu_custom_call.1} parent=67 // pred_check
          %p391 = pneg %p120
        $region70: #{tpu_custom_call.1} parent=67 // pred_check_branch
          %393 = sbr.rel (%p391) target = $region72
        $region71: #{tpu_custom_call.1} parent=67 // pred_region
          %s394 = sand.u32 %s105, 1
          %s395 = scalar_lea.sflag [#allocation5], %s394
          %s396 = sand.u32 %s105, 1
          %s397 = smul.addr %s396, 8
          %s398 = scalar_lea.vmem [#allocation9], %s397
          %399 = dma.done %s395, 128
        $region72: #{tpu_custom_call.1} parent=67 // pred_fallthru
          _
      $region68: #{tpu_custom_call.1} parent=5 // pred_fallthru
        _
    $region6: #{tpu_custom_call.1} parent=1 // loop_footer
      %s22 = sadd.s32 1, %s18
    $region7: #{tpu_custom_call.1} parent=1 // loop_footer_branch
      %17 = sbr.rel target = $region3
    $region8: #{tpu_custom_call.1} parent=1 // loop_exit
      _
    %400 = vsyncpa [#allocation4], 1
    %s401 = scalar_lea.sflag [#allocation4], 1
    %402 = vsyncpa %s401, 1
    %403 = vsyncpa [#allocation7], 1
    %s404 = scalar_lea.sflag [#allocation7], 1
    %405 = vsyncpa %s404, 1
    %406 = vsyncpa [#allocation5], 1
    %s407 = scalar_lea.sflag [#allocation5], 1
    %408 = vsyncpa %s407, 1

</llo_original>
